<compile_context>
chip_gen: v6e
topology: v6e:2x2x1
jax: 0.10.0
libtpu: 0.0.40
codegen_flags: <defaults>
</compile_context>

<pallas_src>
import functools

import jax
import jax.numpy as jnp
from jax.experimental import pallas as pl
from jax.experimental.pallas import tpu as pltpu


def _round_up(n, m):
    return ((n + m - 1) // m) * m


def _net_r_kernel(x_ref,
                  w1_ref, b1_ref,
                  w2_ref, b2_ref,
                  w3_ref, b3_ref,
                  w4_ref, b4_ref,
                  w5_ref, b5_ref,
                  w6_ref, b6_ref,
                  o_ref):
    """One batch tile of the MLP. Weights W1..W5 are bf16, biases/W6 are f32."""

    def dense(h, w_ref, b_ref):
        # bf16 operands, f32 accumulation on the MXU.
        return jnp.dot(h.astype(jnp.bfloat16), w_ref[...],
                       preferred_element_type=jnp.float32) + b_ref[...]

    x = x_ref[...]
    h = jnp.maximum(dense(x, w1_ref, b1_ref), 0.0)   # fc1 + relu
    h = jnp.maximum(dense(h, w2_ref, b2_ref), 0.0)   # fc2 + relu
    h = jnp.maximum(dense(h, w3_ref, b3_ref), 0.0)   # fc3 + relu (dropout: eval)
    h = jnp.tanh(dense(h, w4_ref, b4_ref))           # fc4 + tanh
    h = jnp.maximum(dense(h, w5_ref, b5_ref), 0.0)   # fc5 + relu (dropout: eval)
    # fc6 (hidden -> 1): VPU multiply + lane reduction; w6_ref is a (1, H) row.
    y = jnp.sum(h * w6_ref[...], axis=-1, keepdims=True) + b6_ref[...]
    o_ref[...] = y.astype(o_ref.dtype)


@functools.partial(jax.jit, static_argnames=("train", "tile_b"))
def net_r_forward(x, params, train=False, tile_b=512):
    """Pallas forward for Net_r (lstm_active == 0).

    x: (B, input_size) float32
    params: dict with W1..W6 of shape (in, out) and b1..b6 of shape (1, out)
    returns: (B, 1) float32
    """
    # TODO(synk): train=True dropout would need pltpu.prng_seed/prng_random_bits
    # inside the kernel; the eval path (dropout == identity) is exact.
    del train

    B, input_size = x.shape
    hidden = params["W1"].shape[1]

    # Batch tile: multiple of 8 (f32 sublane), capped by tile_b and by B itself.
    tb = _round_up(min(tile_b, _round_up(B, 8)), 8)
    padded_B = _round_up(B, tb)
    if padded_B != B:
        x = jnp.pad(x, ((0, padded_B - B), (0, 0)))
    grid = (pl.cdiv(padded_B, tb),)

    # bf16 weights for the MXU layers; f32 biases; W6 as an f32 (1, hidden) row.
    w_bf = [params[f"W{i}"].astype(jnp.bfloat16) for i in range(1, 6)]
    b_f32 = [params[f"b{i}"].astype(jnp.float32) for i in range(1, 7)]
    w6_row = params["W6"].astype(jnp.float32).T            # (1, hidden)

    operands = [x]
    for i in range(5):
        operands += [w_bf[i], b_f32[i]]
    operands += [w6_row, b_f32[5]]

    def _const(i):          # weights stay resident: same block every grid step
        return (0, 0)

    in_specs = [pl.BlockSpec((tb, input_size), lambda i: (i, 0))]
    for i in range(5):
        in_specs.append(pl.BlockSpec(w_bf[i].shape, _const))
        in_specs.append(pl.BlockSpec((1, hidden), _const))
    in_specs.append(pl.BlockSpec((1, hidden), _const))      # W6 row
    in_specs.append(pl.BlockSpec((1, 1), _const))            # b6

    out_specs = pl.BlockSpec((tb, 1), lambda i: (i, 0))

    param_bytes = sum(int(p.size) * p.dtype.itemsize for p in operands[1:])
    cost = pl.CostEstimate(
        flops=2 * padded_B * (input_size * hidden + 4 * hidden * hidden + hidden),
        transcendentals=padded_B * hidden,                       # tanh layer
        bytes_accessed=padded_B * (input_size + 1) * 4 + param_bytes,
    )

    out = pl.pallas_call(
        _net_r_kernel,
        grid=grid,
        in_specs=in_specs,
        out_specs=out_specs,
        out_shape=jax.ShapeDtypeStruct((padded_B, 1), jnp.float32),
        compiler_params=pltpu.CompilerParams(
            dimension_semantics=("parallel",)),   # v7x: shard batch over 2 TCs
        cost_estimate=cost,
    )(*operands)

    return out[:B]


def init_params(key, input_size, hidden_size):
    """Deterministic init matching nn.Linear shapes (stored transposed: (in, out))."""
    dims = [
        (input_size, hidden_size),   # fc1
        (hidden_size, hidden_size),  # fc2
        (hidden_size, hidden_size),  # fc3
        (hidden_size, hidden_size),  # fc4
        (hidden_size, hidden_size),  # fc5
        (hidden_size, 1),            # fc6
    ]
    params = {}
    for i, (fan_in, fan_out) in enumerate(dims, start=1):
        key, kw, kb = jax.random.split(key, 3)
        bound = 1.0 / jnp.sqrt(jnp.float32(fan_in))
        params[f"W{i}"] = jax.random.uniform(
            kw, (fan_in, fan_out), jnp.float32, -bound, bound)
        params[f"b{i}"] = jax.random.uniform(
            kb, (1, fan_out), jnp.float32, -bound, bound)
    return params


def _reference_forward(x, params):
    """Pure-JAX reference using the same bf16-operand / f32-accumulate math."""
    def dense(h, w, b):
        return jnp.dot(h.astype(jnp.bfloat16), w.astype(jnp.bfloat16),
                       preferred_element_type=jnp.float32) + b

    h = jnp.maximum(dense(x, params["W1"], params["b1"]), 0.0)
    h = jnp.maximum(dense(h, params["W2"], params["b2"]), 0.0)
    h = jnp.maximum(dense(h, params["W3"], params["b3"]), 0.0)
    h = jnp.tanh(dense(h, params["W4"], params["b4"]))
    h = jnp.maximum(dense(h, params["W5"], params["b5"]), 0.0)
    return jnp.sum(h * params["W6"].T, axis=-1, keepdims=True) + params["b6"]


if __name__ == "__main__":
    key = jax.random.PRNGKey(0)
    input_size, hidden_size = 16, 32

    k_params, k_x1, k_x2 = jax.random.split(key, 3)
    params = init_params(k_params, input_size, hidden_size)

    # Small batch (single grid step, tile == batch).
    x_small = jax.random.normal(k_x1, (8, input_size), jnp.float32)
    out_small = jax.block_until_ready(net_r_forward(x_small, params, train=False))
    ref_small = _reference_forward(x_small, params)
    assert out_small.shape == (8, 1), out_small.shape
    assert jnp.allclose(out_small, ref_small, atol=1e-4, rtol=1e-4), \
        "mismatch vs JAX reference (small batch)"

    # Larger, non-multiple batch: exercises the grid, pipelining and padding path.
    x_big = jax.random.normal(k_x2, (300, input_size), jnp.float32)
    out_big = jax.block_until_ready(
        net_r_forward(x_big, params, train=False, tile_b=128))
    ref_big = _reference_forward(x_big, params)
    assert out_big.shape == (300, 1), out_big.shape
    assert jnp.allclose(out_big, ref_big, atol=1e-4, rtol=1e-4), \
        "mismatch vs JAX reference (large batch)"

    print("KERNEL_OK")
</pallas_src>

<mosaic_0001>
module attributes {stable_mosaic.version = 11 : i64} {
  func.func @_net_r_kernel(%arg0: i32, %arg1: memref<8x16xf32, #tpu.memory_space<vmem>>, %arg2: memref<16x32xbf16, #tpu.memory_space<vmem>>, %arg3: memref<1x32xf32, #tpu.memory_space<vmem>>, %arg4: memref<32x32xbf16, #tpu.memory_space<vmem>>, %arg5: memref<1x32xf32, #tpu.memory_space<vmem>>, %arg6: memref<32x32xbf16, #tpu.memory_space<vmem>>, %arg7: memref<1x32xf32, #tpu.memory_space<vmem>>, %arg8: memref<32x32xbf16, #tpu.memory_space<vmem>>, %arg9: memref<1x32xf32, #tpu.memory_space<vmem>>, %arg10: memref<32x32xbf16, #tpu.memory_space<vmem>>, %arg11: memref<1x32xf32, #tpu.memory_space<vmem>>, %arg12: memref<1x32xf32, #tpu.memory_space<vmem>>, %arg13: memref<1x1xf32, #tpu.memory_space<vmem>>, %arg14: memref<8x1xf32, #tpu.memory_space<vmem>>) attributes {dimension_semantics = [#tpu.dimension_semantics<parallel>], iteration_bounds = array<i64: 1>, scalar_prefetch = 0 : i64, scratch_operands = 0 : i64, tpu.core_type = #tpu.core_type<tc>, window_params = [{transform_indices = @transform_0, window_bounds = array<i64: 8, 16>}, {pipeline_mode = #tpu.pipeline_mode<synchronous>, transform_indices = @transform_1, window_bounds = array<i64: 16, 32>}, {pipeline_mode = #tpu.pipeline_mode<synchronous>, transform_indices = @transform_2, window_bounds = array<i64: 1, 32>}, {pipeline_mode = #tpu.pipeline_mode<synchronous>, transform_indices = @transform_3, window_bounds = array<i64: 32, 32>}, {pipeline_mode = #tpu.pipeline_mode<synchronous>, transform_indices = @transform_4, window_bounds = array<i64: 1, 32>}, {pipeline_mode = #tpu.pipeline_mode<synchronous>, transform_indices = @transform_5, window_bounds = array<i64: 32, 32>}, {pipeline_mode = #tpu.pipeline_mode<synchronous>, transform_indices = @transform_6, window_bounds = array<i64: 1, 32>}, {pipeline_mode = #tpu.pipeline_mode<synchronous>, transform_indices = @transform_7, window_bounds = array<i64: 32, 32>}, {pipeline_mode = #tpu.pipeline_mode<synchronous>, transform_indices = @transform_8, window_bounds = array<i64: 1, 32>}, {pipeline_mode = #tpu.pipeline_mode<synchronous>, transform_indices = @transform_9, window_bounds = array<i64: 32, 32>}, {pipeline_mode = #tpu.pipeline_mode<synchronous>, transform_indices = @transform_10, window_bounds = array<i64: 1, 32>}, {pipeline_mode = #tpu.pipeline_mode<synchronous>, transform_indices = @transform_11, window_bounds = array<i64: 1, 32>}, {pipeline_mode = #tpu.pipeline_mode<synchronous>, transform_indices = @transform_12, window_bounds = array<i64: 1, 1>}, {transform_indices = @transform_13, window_bounds = array<i64: 8, 1>}]} {
    %c0 = arith.constant 0 : index
    %c0_0 = arith.constant 0 : index
    %0 = vector.load %arg1[%c0, %c0_0] : memref<8x16xf32, #tpu.memory_space<vmem>>, vector<8x16xf32>
    %1 = arith.truncf %0 : vector<8x16xf32> to vector<8x16xbf16>
    %c0_1 = arith.constant 0 : index
    %c0_2 = arith.constant 0 : index
    %2 = vector.load %arg2[%c0_1, %c0_2] : memref<16x32xbf16, #tpu.memory_space<vmem>>, vector<16x32xbf16>
    %cst = arith.constant dense<0.000000e+00> : vector<8x32xf32>
    %3 = tpu.matmul %1, %2, %cst {dimension_numbers = #tpu.dot_dimension_numbers<[1], [0], [0], [1], [0, 0, 1, 1], [], []>} : vector<8x16xbf16>, vector<16x32xbf16>, vector<8x32xf32> -> vector<8x32xf32>
    %c0_3 = arith.constant 0 : index
    %c0_4 = arith.constant 0 : index
    %4 = vector.load %arg3[%c0_3, %c0_4] : memref<1x32xf32, #tpu.memory_space<vmem>>, vector<1x32xf32>
    %5 = vector.broadcast %4 : vector<1x32xf32> to vector<8x32xf32>
    %6 = arith.addf %3, %5 : vector<8x32xf32>
    %cst_5 = arith.constant 0.000000e+00 : f32
    %7 = vector.broadcast %cst_5 : f32 to vector<8x32xf32>
    %8 = arith.maximumf %6, %7 : vector<8x32xf32>
    %9 = arith.truncf %8 : vector<8x32xf32> to vector<8x32xbf16>
    %c0_6 = arith.constant 0 : index
    %c0_7 = arith.constant 0 : index
    %10 = vector.load %arg4[%c0_6, %c0_7] : memref<32x32xbf16, #tpu.memory_space<vmem>>, vector<32x32xbf16>
    %cst_8 = arith.constant dense<0.000000e+00> : vector<8x32xf32>
    %11 = tpu.matmul %9, %10, %cst_8 {dimension_numbers = #tpu.dot_dimension_numbers<[1], [0], [0], [1], [0, 0, 1, 1], [], []>} : vector<8x32xbf16>, vector<32x32xbf16>, vector<8x32xf32> -> vector<8x32xf32>
    %c0_9 = arith.constant 0 : index
    %c0_10 = arith.constant 0 : index
    %12 = vector.load %arg5[%c0_9, %c0_10] : memref<1x32xf32, #tpu.memory_space<vmem>>, vector<1x32xf32>
    %13 = vector.broadcast %12 : vector<1x32xf32> to vector<8x32xf32>
    %14 = arith.addf %11, %13 : vector<8x32xf32>
    %cst_11 = arith.constant 0.000000e+00 : f32
    %15 = vector.broadcast %cst_11 : f32 to vector<8x32xf32>
    %16 = arith.maximumf %14, %15 : vector<8x32xf32>
    %17 = arith.truncf %16 : vector<8x32xf32> to vector<8x32xbf16>
    %c0_12 = arith.constant 0 : index
    %c0_13 = arith.constant 0 : index
    %18 = vector.load %arg6[%c0_12, %c0_13] : memref<32x32xbf16, #tpu.memory_space<vmem>>, vector<32x32xbf16>
    %cst_14 = arith.constant dense<0.000000e+00> : vector<8x32xf32>
    %19 = tpu.matmul %17, %18, %cst_14 {dimension_numbers = #tpu.dot_dimension_numbers<[1], [0], [0], [1], [0, 0, 1, 1], [], []>} : vector<8x32xbf16>, vector<32x32xbf16>, vector<8x32xf32> -> vector<8x32xf32>
    %c0_15 = arith.constant 0 : index
    %c0_16 = arith.constant 0 : index
    %20 = vector.load %arg7[%c0_15, %c0_16] : memref<1x32xf32, #tpu.memory_space<vmem>>, vector<1x32xf32>
    %21 = vector.broadcast %20 : vector<1x32xf32> to vector<8x32xf32>
    %22 = arith.addf %19, %21 : vector<8x32xf32>
    %cst_17 = arith.constant 0.000000e+00 : f32
    %23 = vector.broadcast %cst_17 : f32 to vector<8x32xf32>
    %24 = arith.maximumf %22, %23 : vector<8x32xf32>
    %25 = arith.truncf %24 : vector<8x32xf32> to vector<8x32xbf16>
    %c0_18 = arith.constant 0 : index
    %c0_19 = arith.constant 0 : index
    %26 = vector.load %arg8[%c0_18, %c0_19] : memref<32x32xbf16, #tpu.memory_space<vmem>>, vector<32x32xbf16>
    %cst_20 = arith.constant dense<0.000000e+00> : vector<8x32xf32>
    %27 = tpu.matmul %25, %26, %cst_20 {dimension_numbers = #tpu.dot_dimension_numbers<[1], [0], [0], [1], [0, 0, 1, 1], [], []>} : vector<8x32xbf16>, vector<32x32xbf16>, vector<8x32xf32> -> vector<8x32xf32>
    %c0_21 = arith.constant 0 : index
    %c0_22 = arith.constant 0 : index
    %28 = vector.load %arg9[%c0_21, %c0_22] : memref<1x32xf32, #tpu.memory_space<vmem>>, vector<1x32xf32>
    %29 = vector.broadcast %28 : vector<1x32xf32> to vector<8x32xf32>
    %30 = arith.addf %27, %29 : vector<8x32xf32>
    %31 = math.tanh %30 : vector<8x32xf32>
    %32 = arith.truncf %31 : vector<8x32xf32> to vector<8x32xbf16>
    %c0_23 = arith.constant 0 : index
    %c0_24 = arith.constant 0 : index
    %33 = vector.load %arg10[%c0_23, %c0_24] : memref<32x32xbf16, #tpu.memory_space<vmem>>, vector<32x32xbf16>
    %cst_25 = arith.constant dense<0.000000e+00> : vector<8x32xf32>
    %34 = tpu.matmul %32, %33, %cst_25 {dimension_numbers = #tpu.dot_dimension_numbers<[1], [0], [0], [1], [0, 0, 1, 1], [], []>} : vector<8x32xbf16>, vector<32x32xbf16>, vector<8x32xf32> -> vector<8x32xf32>
    %c0_26 = arith.constant 0 : index
    %c0_27 = arith.constant 0 : index
    %35 = vector.load %arg11[%c0_26, %c0_27] : memref<1x32xf32, #tpu.memory_space<vmem>>, vector<1x32xf32>
    %36 = vector.broadcast %35 : vector<1x32xf32> to vector<8x32xf32>
    %37 = arith.addf %34, %36 : vector<8x32xf32>
    %cst_28 = arith.constant 0.000000e+00 : f32
    %38 = vector.broadcast %cst_28 : f32 to vector<8x32xf32>
    %39 = arith.maximumf %37, %38 : vector<8x32xf32>
    %c0_29 = arith.constant 0 : index
    %c0_30 = arith.constant 0 : index
    %40 = vector.load %arg12[%c0_29, %c0_30] : memref<1x32xf32, #tpu.memory_space<vmem>>, vector<1x32xf32>
    %41 = vector.broadcast %40 : vector<1x32xf32> to vector<8x32xf32>
    %42 = arith.mulf %39, %41 : vector<8x32xf32>
    %cst_31 = arith.constant dense<0.000000e+00> : vector<8xf32>
    %43 = vector.multi_reduction <add>, %42, %cst_31 [1] : vector<8x32xf32> to vector<8xf32>
    %44 = vector.shape_cast %43 : vector<8xf32> to vector<8x1xf32>
    %c0_32 = arith.constant 0 : index
    %c0_33 = arith.constant 0 : index
    %45 = vector.load %arg13[%c0_32, %c0_33] : memref<1x1xf32, #tpu.memory_space<vmem>>, vector<1x1xf32>
    %46 = vector.broadcast %45 : vector<1x1xf32> to vector<8x1xf32>
    %47 = arith.addf %44, %46 : vector<8x1xf32>
    %c0_34 = arith.constant 0 : index
    %c0_35 = arith.constant 0 : index
    %48 = vector.load %arg14[%c0_34, %c0_35] : memref<8x1xf32, #tpu.memory_space<vmem>>, vector<8x1xf32>
    tpu.vector_store %arg14[%c0_34, %c0_35], %47 {strides = array<i32>} : memref<8x1xf32, #tpu.memory_space<vmem>>, vector<8x1xf32>,
    return
  }
  func.func @transform_0(%arg0: i32) -> (i32, i32) {
    %c0_i32 = arith.constant 0 : i32
    %c0_i32_0 = arith.constant 0 : i32
    return %arg0, %c0_i32 : i32, i32
  }
  func.func @transform_1(%arg0: i32) -> (i32, i32) {
    %c0_i32 = arith.constant 0 : i32
    %c0_i32_0 = arith.constant 0 : i32
    %c0_i32_1 = arith.constant 0 : i32
    return %c0_i32, %c0_i32_0 : i32, i32
  }
  func.func @transform_2(%arg0: i32) -> (i32, i32) {
    %c0_i32 = arith.constant 0 : i32
    %c0_i32_0 = arith.constant 0 : i32
    %c0_i32_1 = arith.constant 0 : i32
    return %c0_i32, %c0_i32_0 : i32, i32
  }
  func.func @transform_3(%arg0: i32) -> (i32, i32) {
    %c0_i32 = arith.constant 0 : i32
    %c0_i32_0 = arith.constant 0 : i32
    %c0_i32_1 = arith.constant 0 : i32
    return %c0_i32, %c0_i32_0 : i32, i32
  }
  func.func @transform_4(%arg0: i32) -> (i32, i32) {
    %c0_i32 = arith.constant 0 : i32
    %c0_i32_0 = arith.constant 0 : i32
    %c0_i32_1 = arith.constant 0 : i32
    return %c0_i32, %c0_i32_0 : i32, i32
  }
  func.func @transform_5(%arg0: i32) -> (i32, i32) {
    %c0_i32 = arith.constant 0 : i32
    %c0_i32_0 = arith.constant 0 : i32
    %c0_i32_1 = arith.constant 0 : i32
    return %c0_i32, %c0_i32_0 : i32, i32
  }
  func.func @transform_6(%arg0: i32) -> (i32, i32) {
    %c0_i32 = arith.constant 0 : i32
    %c0_i32_0 = arith.constant 0 : i32
    %c0_i32_1 = arith.constant 0 : i32
    return %c0_i32, %c0_i32_0 : i32, i32
  }
  func.func @transform_7(%arg0: i32) -> (i32, i32) {
    %c0_i32 = arith.constant 0 : i32
    %c0_i32_0 = arith.constant 0 : i32
    %c0_i32_1 = arith.constant 0 : i32
    return %c0_i32, %c0_i32_0 : i32, i32
  }
  func.func @transform_8(%arg0: i32) -> (i32, i32) {
    %c0_i32 = arith.constant 0 : i32
    %c0_i32_0 = arith.constant 0 : i32
    %c0_i32_1 = arith.constant 0 : i32
    return %c0_i32, %c0_i32_0 : i32, i32
  }
  func.func @transform_9(%arg0: i32) -> (i32, i32) {
    %c0_i32 = arith.constant 0 : i32
    %c0_i32_0 = arith.constant 0 : i32
    %c0_i32_1 = arith.constant 0 : i32
    return %c0_i32, %c0_i32_0 : i32, i32
  }
  func.func @transform_10(%arg0: i32) -> (i32, i32) {
    %c0_i32 = arith.constant 0 : i32
    %c0_i32_0 = arith.constant 0 : i32
    %c0_i32_1 = arith.constant 0 : i32
    return %c0_i32, %c0_i32_0 : i32, i32
  }
  func.func @transform_11(%arg0: i32) -> (i32, i32) {
    %c0_i32 = arith.constant 0 : i32
    %c0_i32_0 = arith.constant 0 : i32
    %c0_i32_1 = arith.constant 0 : i32
    return %c0_i32, %c0_i32_0 : i32, i32
  }
  func.func @transform_12(%arg0: i32) -> (i32, i32) {
    %c0_i32 = arith.constant 0 : i32
    %c0_i32_0 = arith.constant 0 : i32
    %c0_i32_1 = arith.constant 0 : i32
    return %c0_i32, %c0_i32_0 : i32, i32
  }
  func.func @transform_13(%arg0: i32) -> (i32, i32) {
    %c0_i32 = arith.constant 0 : i32
    %c0_i32_0 = arith.constant 0 : i32
    return %arg0, %c0_i32 : i32, i32
  }
}

</mosaic_0001>

<llo_original>
// kernel: net_r_forward.1
$region0: #{net_r_forward.1}
  #allocation0 [shape = 'u32[]', space=smem, size = 0x4, offset = 0x4, fixed_abs, tag = 'smem constant byte address 0x4 - core index']
  #allocation1 [shape = 'u32[144,128]{1,0:T(1,128)}', space=vmem, size = 0x12000, scoped, tag = 'internal scratch']
  #allocation2 [shape = 'f32[1,1]{1,0:T(1,128)S(1)}', space=vmem, size = 0x200, scoped, tag = 'scoped memory for net_r_forward.1']
  %s0 = inlined_call_operand.vmem [shape: f32[8,16], index: 0, kind: input, shape index: {}]
  %s1 = inlined_call_operand.vmem [shape: bf16[16,32], index: 1, kind: input, shape index: {}]
  %s2 = inlined_call_operand.vmem [shape: f32[1,32], index: 2, kind: input, shape index: {}]
  %s3 = inlined_call_operand.vmem [shape: bf16[32,32], index: 3, kind: input, shape index: {}]
  %s4 = inlined_call_operand.vmem [shape: f32[1,32], index: 4, kind: input, shape index: {}]
  %s5 = inlined_call_operand.vmem [shape: bf16[32,32], index: 5, kind: input, shape index: {}]
  %s6 = inlined_call_operand.vmem [shape: f32[1,32], index: 6, kind: input, shape index: {}]
  %s7 = inlined_call_operand.vmem [shape: bf16[32,32], index: 7, kind: input, shape index: {}]
  %s8 = inlined_call_operand.vmem [shape: f32[1,32], index: 8, kind: input, shape index: {}]
  %s9 = inlined_call_operand.vmem [shape: bf16[32,32], index: 9, kind: input, shape index: {}]
  %s10 = inlined_call_operand.vmem [shape: f32[1,32], index: 10, kind: input, shape index: {}]
  %s11 = inlined_call_operand.vmem [shape: f32[1,32], index: 11, kind: input, shape index: {}]
  %s12 = inlined_call_operand.<no memory space> [shape: f32[1,1], index: 12, kind: input, shape index: {}]
  %s13 = inlined_call_operand.vmem [shape: f32[8,1], index: 13, kind: output, shape index: {}]
  %s14 = sld [smem:[#allocation0]]
  $region62: #{net_r_forward.1} parent=0
    _
  %s16 = ssub.s32 1, %s14
  %s17 = scalar_select 0, %s16, %s14
  %v18 = vstv %s12
  %19 = vst [vmem:[#allocation2] sm:$0x1] %v18
  // Predicated region
  $region2: #{net_r_forward.1} parent=0 // pred_check
    _
  $region3: #{net_r_forward.1} parent=0 // pred_check_branch
    %21 = sbr.rel (0) target = $region5
  $region4: #{net_r_forward.1} parent=0 // pred_region
    _
  $region5: #{net_r_forward.1} parent=0 // pred_fallthru
    _
  // Predicated region
  $region6: #{net_r_forward.1} parent=0 // pred_check
    _
  $region7: #{net_r_forward.1} parent=0 // pred_check_branch
    %23 = sbr.rel (0) target = $region9
  $region8: #{net_r_forward.1} parent=0 // pred_region
    _
  $region9: #{net_r_forward.1} parent=0 // pred_fallthru
    _
  // Predicated region
  $region10: #{net_r_forward.1} parent=0 // pred_check
    _
  $region11: #{net_r_forward.1} parent=0 // pred_check_branch
    %25 = sbr.rel (0) target = $region13
  $region12: #{net_r_forward.1} parent=0 // pred_region
    _
  $region13: #{net_r_forward.1} parent=0 // pred_fallthru
    _
  // Predicated region
  $region14: #{net_r_forward.1} parent=0 // pred_check
    _
  $region15: #{net_r_forward.1} parent=0 // pred_check_branch
    %27 = sbr.rel (0) target = $region17
  $region16: #{net_r_forward.1} parent=0 // pred_region
    _
  $region17: #{net_r_forward.1} parent=0 // pred_fallthru
    _
  // Predicated region
  $region18: #{net_r_forward.1} parent=0 // pred_check
    _
  $region19: #{net_r_forward.1} parent=0 // pred_check_branch
    %29 = sbr.rel (0) target = $region21
  $region20: #{net_r_forward.1} parent=0 // pred_region
    _
  $region21: #{net_r_forward.1} parent=0 // pred_fallthru
    _
  // Predicated region
  $region22: #{net_r_forward.1} parent=0 // pred_check
    _
  $region23: #{net_r_forward.1} parent=0 // pred_check_branch
    %31 = sbr.rel (0) target = $region25
  $region24: #{net_r_forward.1} parent=0 // pred_region
    _
  $region25: #{net_r_forward.1} parent=0 // pred_fallthru
    _
  // Predicated region
  $region26: #{net_r_forward.1} parent=0 // pred_check
    _
  $region27: #{net_r_forward.1} parent=0 // pred_check_branch
    %33 = sbr.rel (0) target = $region29
  $region28: #{net_r_forward.1} parent=0 // pred_region
    _
  $region29: #{net_r_forward.1} parent=0 // pred_fallthru
    _
  // Predicated region
  $region30: #{net_r_forward.1} parent=0 // pred_check
    _
  $region31: #{net_r_forward.1} parent=0 // pred_check_branch
    %35 = sbr.rel (0) target = $region33
  $region32: #{net_r_forward.1} parent=0 // pred_region
    _
  $region33: #{net_r_forward.1} parent=0 // pred_fallthru
    _
  // Predicated region
  $region34: #{net_r_forward.1} parent=0 // pred_check
    _
  $region35: #{net_r_forward.1} parent=0 // pred_check_branch
    %37 = sbr.rel (0) target = $region37
  $region36: #{net_r_forward.1} parent=0 // pred_region
    _
  $region37: #{net_r_forward.1} parent=0 // pred_fallthru
    _
  // Predicated region
  $region38: #{net_r_forward.1} parent=0 // pred_check
    _
  $region39: #{net_r_forward.1} parent=0 // pred_check_branch
    %39 = sbr.rel (0) target = $region41
  $region40: #{net_r_forward.1} parent=0 // pred_region
    _
  $region41: #{net_r_forward.1} parent=0 // pred_fallthru
    _
  // Predicated region
  $region42: #{net_r_forward.1} parent=0 // pred_check
    _
  $region43: #{net_r_forward.1} parent=0 // pred_check_branch
    %41 = sbr.rel (0) target = $region45
  $region44: #{net_r_forward.1} parent=0 // pred_region
    _
  $region45: #{net_r_forward.1} parent=0 // pred_fallthru
    _
  // Predicated region
  $region46: #{net_r_forward.1} parent=0 // pred_check
    _
  $region47: #{net_r_forward.1} parent=0 // pred_check_branch
    %43 = sbr.rel (0) target = $region49
  $region48: #{net_r_forward.1} parent=0 // pred_region
    _
  $region49: #{net_r_forward.1} parent=0 // pred_fallthru
    _
  // Predicated region
  $region50: #{net_r_forward.1} parent=0 // pred_check
    _
  $region51: #{net_r_forward.1} parent=0 // pred_check_branch
    %45 = sbr.rel (0) target = $region53
  $region52: #{net_r_forward.1} parent=0 // pred_region
    _
  $region53: #{net_r_forward.1} parent=0 // pred_fallthru
    _
  %v47 = vld [vmem:[%s0] sm:$0xff]
  %v48 = vpack.c.bf16 %v47, %v47
  %v49 = vld [vmem:[%s1] sm:$0xf]
  %v50 = vld [vmem:[%s1 + $0x4] sm:$0xf]
  %v51 = vld [vmem:[%s2] sm:$0x1]
  %v53 = vlaneseq
  %v54 = vshrl.u32 %v53, 7
  %v55 = vsub.s32 0, %v54
  %v56 = vrot.slane %v51, %v55
  %v60 = vunpack.c.l.b16 %v49
  %v61 = vunpack.c.l.b16 %v50
  %v62 = vpack.c.b16 %v61, %v60
  %vm64 = vcmask 130048
  %v66 = vsel %vm64, %v48, 0
  %68 = vmatprep.subr.bf16.mxu0 0
  %69 = vmatpush1.bf16.msra.mxu0 0
  %70 = vmatprep.subr.bf16.mxu0 0
  %71 = vmatpush1.bf16.msra.mxu0 0
  %72 = vmatprep.subr.bf16.mxu0 0
  %73 = vmatpush1.bf16.msra.mxu0 0
  %74 = vmatprep.subr.bf16.mxu0 0
  %75 = vmatpush1.bf16.msra.mxu0 0
  %76 = vmatprep.subr.bf16.mxu0 0
  %77 = vmatpush1.bf16.msra.mxu0 0
  %78 = vmatprep.subr.bf16.mxu0 0
  %79 = vmatpush1.bf16.msra.mxu0 0
  %80 = vmatprep.subr.bf16.mxu0 0
  %81 = vmatpush1.bf16.msra.mxu0 0
  %82 = vmatprep.subr.bf16.mxu0 0
  %83 = vmatpush1.bf16.msra.mxu0 %v62
  %84 = vmatprep.subr.bf16.mxu0 0
  %85 = vmatpush2.bf16.msra.mxu0 0
  %86 = vmatprep.subr.bf16.mxu0 0
  %87 = vmatpush2.bf16.msra.mxu0 0
  %88 = vmatprep.subr.bf16.mxu0 0
  %89 = vmatpush2.bf16.msra.mxu0 0
  %90 = vmatprep.subr.bf16.mxu0 0
  %91 = vmatpush2.bf16.msra.mxu0 0
  %92 = vmatprep.subr.bf16.mxu0 0
  %93 = vmatpush2.bf16.msra.mxu0 0
  %94 = vmatprep.subr.bf16.mxu0 0
  %95 = vmatpush2.bf16.msra.mxu0 0
  %96 = vmatprep.subr.bf16.mxu0 0
  %97 = vmatpush2.bf16.msra.mxu0 0
  %98 = vmatprep.subr.bf16.mxu0 0
  %99 = vmatpush2.bf16.msra.mxu0 0
  %100 = vmatprep.mubr.bf16.mxu0 0
  %101 = vmatmul.mubr.bf16.gmra.mxu0 %v66
  %v102 = vpop.f32.mrf.mxu0
  %v103 = vadd.f32 %v56, %v102
  %v104 = vpop.f32.mrf.mxu0
  %v105 = vpop.f32.mrf.mxu0
  %v106 = vpop.f32.mrf.mxu0
  %107 = vdwg.mxu0
  %v108 = vmax.f32 %v103, 0.0
  %v109 = vpack.c.bf16 %v108, %v108
  %v110 = vld [vmem:[%s3] sm:$0xf]
  %v111 = vld [vmem:[%s3 + $0x4] sm:$0xf]
  %v112 = vld [vmem:[%s3 + $0x8] sm:$0xf]
  %v113 = vld [vmem:[%s3 + $0xc] sm:$0xf]
  %v114 = vld [vmem:[%s4] sm:$0x1]
  %v116 = vlaneseq
  %v117 = vshrl.u32 %v116, 7
  %v118 = vsub.s32 0, %v117
  %v119 = vrot.slane %v114, %v118
  %v125 = vunpack.c.l.b16 %v110
  %v126 = vunpack.c.l.b16 %v111
  %v127 = vunpack.c.l.b16 %v112
  %v128 = vunpack.c.l.b16 %v113
  %v129 = vpack.c.b16 %v126, %v125
  %v130 = vpack.c.b16 %v128, %v127
  %vm133 = vcmask 261120
  %v135 = vsel %vm133, %v109, 0
  %137 = vmatprep.subr.bf16.mxu0 0
  %138 = vmatpush1.bf16.msra.mxu0 0
  %139 = vmatprep.subr.bf16.mxu0 0
  %140 = vmatpush1.bf16.msra.mxu0 0
  %141 = vmatprep.subr.bf16.mxu0 0
  %142 = vmatpush1.bf16.msra.mxu0 0
  %143 = vmatprep.subr.bf16.mxu0 0
  %144 = vmatpush1.bf16.msra.mxu0 0
  %145 = vmatprep.subr.bf16.mxu0 0
  %146 = vmatpush1.bf16.msra.mxu0 0
  %147 = vmatprep.subr.bf16.mxu0 0
  %148 = vmatpush1.bf16.msra.mxu0 0
  %149 = vmatprep.subr.bf16.mxu0 0
  %150 = vmatpush1.bf16.msra.mxu0 %v130
  %151 = vmatprep.subr.bf16.mxu0 0
  %152 = vmatpush1.bf16.msra.mxu0 %v129
  %153 = vmatprep.subr.bf16.mxu0 0
  %154 = vmatpush2.bf16.msra.mxu0 0
  %155 = vmatprep.subr.bf16.mxu0 0
  %156 = vmatpush2.bf16.msra.mxu0 0
  %157 = vmatprep.subr.bf16.mxu0 0
  %158 = vmatpush2.bf16.msra.mxu0 0
  %159 = vmatprep.subr.bf16.mxu0 0
  %160 = vmatpush2.bf16.msra.mxu0 0
  %161 = vmatprep.subr.bf16.mxu0 0
  %162 = vmatpush2.bf16.msra.mxu0 0
  %163 = vmatprep.subr.bf16.mxu0 0
  %164 = vmatpush2.bf16.msra.mxu0 0
  %165 = vmatprep.subr.bf16.mxu0 0
  %166 = vmatpush2.bf16.msra.mxu0 0
  %167 = vmatprep.subr.bf16.mxu0 0
  %168 = vmatpush2.bf16.msra.mxu0 0
  %169 = vmatprep.mubr.bf16.mxu0 0
  %170 = vmatmul.mubr.bf16.gmra.mxu0 %v135
  %v171 = vpop.f32.mrf.mxu0
  %v172 = vadd.f32 %v119, %v171
  %v173 = vpop.f32.mrf.mxu0
  %v174 = vpop.f32.mrf.mxu0
  %v175 = vpop.f32.mrf.mxu0
  %176 = vdwg.mxu0
  %v177 = vmax.f32 %v172, 0.0
  %v178 = vpack.c.bf16 %v177, %v177
  %v179 = vld [vmem:[%s5] sm:$0xf]
  %v180 = vld [vmem:[%s5 + $0x4] sm:$0xf]
  %v181 = vld [vmem:[%s5 + $0x8] sm:$0xf]
  %v182 = vld [vmem:[%s5 + $0xc] sm:$0xf]
  %v183 = vld [vmem:[%s6] sm:$0x1]
  %v185 = vlaneseq
  %v186 = vshrl.u32 %v185, 7
  %v187 = vsub.s32 0, %v186
  %v188 = vrot.slane %v183, %v187
  %v194 = vunpack.c.l.b16 %v179
  %v195 = vunpack.c.l.b16 %v180
  %v196 = vunpack.c.l.b16 %v181
  %v197 = vunpack.c.l.b16 %v182
  %v198 = vpack.c.b16 %v195, %v194
  %v199 = vpack.c.b16 %v197, %v196
  %v203 = vsel %vm133, %v178, 0
  %205 = vmatprep.subr.bf16.mxu0 0
  %206 = vmatpush1.bf16.msra.mxu0 0
  %207 = vmatprep.subr.bf16.mxu0 0
  %208 = vmatpush1.bf16.msra.mxu0 0
  %209 = vmatprep.subr.bf16.mxu0 0
  %210 = vmatpush1.bf16.msra.mxu0 0
  %211 = vmatprep.subr.bf16.mxu0 0
  %212 = vmatpush1.bf16.msra.mxu0 0
  %213 = vmatprep.subr.bf16.mxu0 0
  %214 = vmatpush1.bf16.msra.mxu0 0
  %215 = vmatprep.subr.bf16.mxu0 0
  %216 = vmatpush1.bf16.msra.mxu0 0
  %217 = vmatprep.subr.bf16.mxu0 0
  %218 = vmatpush1.bf16.msra.mxu0 %v199
  %219 = vmatprep.subr.bf16.mxu0 0
  %220 = vmatpush1.bf16.msra.mxu0 %v198
  %221 = vmatprep.subr.bf16.mxu0 0
  %222 = vmatpush2.bf16.msra.mxu0 0
  %223 = vmatprep.subr.bf16.mxu0 0
  %224 = vmatpush2.bf16.msra.mxu0 0
  %225 = vmatprep.subr.bf16.mxu0 0
  %226 = vmatpush2.bf16.msra.mxu0 0
  %227 = vmatprep.subr.bf16.mxu0 0
  %228 = vmatpush2.bf16.msra.mxu0 0
  %229 = vmatprep.subr.bf16.mxu0 0
  %230 = vmatpush2.bf16.msra.mxu0 0
  %231 = vmatprep.subr.bf16.mxu0 0
  %232 = vmatpush2.bf16.msra.mxu0 0
  %233 = vmatprep.subr.bf16.mxu0 0
  %234 = vmatpush2.bf16.msra.mxu0 0
  %235 = vmatprep.subr.bf16.mxu0 0
  %236 = vmatpush2.bf16.msra.mxu0 0
  %237 = vmatprep.mubr.bf16.mxu0 0
  %238 = vmatmul.mubr.bf16.gmra.mxu0 %v203
  %v239 = vpop.f32.mrf.mxu0
  %v240 = vadd.f32 %v188, %v239
  %v241 = vpop.f32.mrf.mxu0
  %v242 = vpop.f32.mrf.mxu0
  %v243 = vpop.f32.mrf.mxu0
  %244 = vdwg.mxu0
  %v245 = vmax.f32 %v240, 0.0
  %v246 = vpack.c.bf16 %v245, %v245
  %v247 = vld [vmem:[%s7] sm:$0xf]
  %v248 = vld [vmem:[%s7 + $0x4] sm:$0xf]
  %v249 = vld [vmem:[%s7 + $0x8] sm:$0xf]
  %v250 = vld [vmem:[%s7 + $0xc] sm:$0xf]
  %v251 = vld [vmem:[%s8] sm:$0x1]
  %v253 = vlaneseq
  %v254 = vshrl.u32 %v253, 7
  %v255 = vsub.s32 0, %v254
  %v256 = vrot.slane %v251, %v255
  %v262 = vunpack.c.l.b16 %v247
  %v263 = vunpack.c.l.b16 %v248
  %v264 = vunpack.c.l.b16 %v249
  %v265 = vunpack.c.l.b16 %v250
  %v266 = vpack.c.b16 %v263, %v262
  %v267 = vpack.c.b16 %v265, %v264
  %v271 = vsel %vm133, %v246, 0
  %273 = vmatprep.subr.bf16.mxu0 0
  %274 = vmatpush1.bf16.msra.mxu0 0
  %275 = vmatprep.subr.bf16.mxu0 0
  %276 = vmatpush1.bf16.msra.mxu0 0
  %277 = vmatprep.subr.bf16.mxu0 0
  %278 = vmatpush1.bf16.msra.mxu0 0
  %279 = vmatprep.subr.bf16.mxu0 0
  %280 = vmatpush1.bf16.msra.mxu0 0
  %281 = vmatprep.subr.bf16.mxu0 0
  %282 = vmatpush1.bf16.msra.mxu0 0
  %283 = vmatprep.subr.bf16.mxu0 0
  %284 = vmatpush1.bf16.msra.mxu0 0
  %285 = vmatprep.subr.bf16.mxu0 0
  %286 = vmatpush1.bf16.msra.mxu0 %v267
  %287 = vmatprep.subr.bf16.mxu0 0
  %288 = vmatpush1.bf16.msra.mxu0 %v266
  %289 = vmatprep.subr.bf16.mxu0 0
  %290 = vmatpush2.bf16.msra.mxu0 0
  %291 = vmatprep.subr.bf16.mxu0 0
  %292 = vmatpush2.bf16.msra.mxu0 0
  %293 = vmatprep.subr.bf16.mxu0 0
  %294 = vmatpush2.bf16.msra.mxu0 0
  %295 = vmatprep.subr.bf16.mxu0 0
  %296 = vmatpush2.bf16.msra.mxu0 0
  %297 = vmatprep.subr.bf16.mxu0 0
  %298 = vmatpush2.bf16.msra.mxu0 0
  %299 = vmatprep.subr.bf16.mxu0 0
  %300 = vmatpush2.bf16.msra.mxu0 0
  %301 = vmatprep.subr.bf16.mxu0 0
  %302 = vmatpush2.bf16.msra.mxu0 0
  %303 = vmatprep.subr.bf16.mxu0 0
  %304 = vmatpush2.bf16.msra.mxu0 0
  %305 = vmatprep.mubr.bf16.mxu0 0
  %306 = vmatmul.mubr.bf16.gmra.mxu0 %v271
  %v307 = vpop.f32.mrf.mxu0
  %v308 = vadd.f32 %v256, %v307
  %v309 = vpop.f32.mrf.mxu0
  %v310 = vpop.f32.mrf.mxu0
  %v311 = vpop.f32.mrf.mxu0
  %312 = vdwg.mxu0
  %v313 = vtanh.pop %v308
  %v314 = vpack.c.bf16 %v313, %v313
  %v315 = vld [vmem:[%s9] sm:$0xf]
  %v316 = vld [vmem:[%s9 + $0x4] sm:$0xf]
  %v317 = vld [vmem:[%s9 + $0x8] sm:$0xf]
  %v318 = vld [vmem:[%s9 + $0xc] sm:$0xf]
  %v319 = vld [vmem:[%s10] sm:$0x1]
  %v321 = vlaneseq
  %v322 = vshrl.u32 %v321, 7
  %v323 = vsub.s32 0, %v322
  %v324 = vrot.slane %v319, %v323
  %v330 = vunpack.c.l.b16 %v315
  %v331 = vunpack.c.l.b16 %v316
  %v332 = vunpack.c.l.b16 %v317
  %v333 = vunpack.c.l.b16 %v318
  %v334 = vpack.c.b16 %v331, %v330
  %v335 = vpack.c.b16 %v333, %v332
  %v339 = vsel %vm133, %v314, 0
  %341 = vmatprep.subr.bf16.mxu0 0
  %342 = vmatpush1.bf16.msra.mxu0 0
  %343 = vmatprep.subr.bf16.mxu0 0
  %344 = vmatpush1.bf16.msra.mxu0 0
  %345 = vmatprep.subr.bf16.mxu0 0
  %346 = vmatpush1.bf16.msra.mxu0 0
  %347 = vmatprep.subr.bf16.mxu0 0
  %348 = vmatpush1.bf16.msra.mxu0 0
  %349 = vmatprep.subr.bf16.mxu0 0
  %350 = vmatpush1.bf16.msra.mxu0 0
  %351 = vmatprep.subr.bf16.mxu0 0
  %352 = vmatpush1.bf16.msra.mxu0 0
  %353 = vmatprep.subr.bf16.mxu0 0
  %354 = vmatpush1.bf16.msra.mxu0 %v335
  %355 = vmatprep.subr.bf16.mxu0 0
  %356 = vmatpush1.bf16.msra.mxu0 %v334
  %357 = vmatprep.subr.bf16.mxu0 0
  %358 = vmatpush2.bf16.msra.mxu0 0
  %359 = vmatprep.subr.bf16.mxu0 0
  %360 = vmatpush2.bf16.msra.mxu0 0
  %361 = vmatprep.subr.bf16.mxu0 0
  %362 = vmatpush2.bf16.msra.mxu0 0
  %363 = vmatprep.subr.bf16.mxu0 0
  %364 = vmatpush2.bf16.msra.mxu0 0
  %365 = vmatprep.subr.bf16.mxu0 0
  %366 = vmatpush2.bf16.msra.mxu0 0
  %367 = vmatprep.subr.bf16.mxu0 0
  %368 = vmatpush2.bf16.msra.mxu0 0
  %369 = vmatprep.subr.bf16.mxu0 0
  %370 = vmatpush2.bf16.msra.mxu0 0
  %371 = vmatprep.subr.bf16.mxu0 0
  %372 = vmatpush2.bf16.msra.mxu0 0
  %373 = vmatprep.mubr.bf16.mxu0 0
  %374 = vmatmul.mubr.bf16.gmra.mxu0 %v339
  %v375 = vpop.f32.mrf.mxu0
  %v376 = vadd.f32 %v324, %v375
  %v377 = vpop.f32.mrf.mxu0
  %v378 = vpop.f32.mrf.mxu0
  %v379 = vpop.f32.mrf.mxu0
  %380 = vdwg.mxu0
  %v381 = vmax.f32 %v376, 0.0
  %v382 = vld [vmem:[%s11] sm:$0x1]
  %v384 = vlaneseq
  %v385 = vshrl.u32 %v384, 7
  %v386 = vsub.s32 0, %v385
  %v387 = vrot.slane %v382, %v386
  %v389 = vmul.f32 %v381, %v387
  %v390 = vsel %vm133, %v389, 0.0
  %391 = vadd.xlane.f32.xlu0 %v390
  %v392 = vpop.xlane.xlu0 %391
  %v393 = vld [vmem:[#allocation2] sm:$0x1]
  %v395 = vlaneseq
  %v396 = vshrl.u32 %v395, 7
  %v397 = vsub.s32 0, %v396
  %v398 = vrot.slane %v393, %v397
  %v400 = vadd.f32 %v392, %v398
  %vm401 = vcmask 7168
  %402 = vst.msk [vmem:[%s13] sm:$0xff] %vm401, %v400
  // Predicated region
  $region54: #{net_r_forward.1} parent=0 // pred_check
    _
  $region55: #{net_r_forward.1} parent=0 // pred_check_branch
    %404 = sbr.rel (0) target = $region57
  $region56: #{net_r_forward.1} parent=0 // pred_region
    _
  $region57: #{net_r_forward.1} parent=0 // pred_fallthru
    _
  // Predicated region
  $region58: #{net_r_forward.1} parent=0 // pred_check
    _
  $region59: #{net_r_forward.1} parent=0 // pred_check_branch
    %406 = sbr.rel (0) target = $region61
  $region60: #{net_r_forward.1} parent=0 // pred_region
    _
  $region61: #{net_r_forward.1} parent=0 // pred_fallthru
    _

</llo_original>
